<compile_context>
chip_gen: v6e
topology: v6e:2x2x1
jax: 0.10.0
libtpu: 0.0.40
codegen_flags: <defaults>
</compile_context>

<pallas_src>
import functools

import jax
import jax.numpy as jnp
from jax.experimental import pallas as pl
from jax.experimental.pallas import tpu as pltpu

EMBED_DIM = 64        # real hidden size of the PyTorch module
OUTPUT_DIM = 64
D_PAD = 128           # lane-dense padded hidden / output width
FF_DIM = 128
N_HEADS = 4           # numerically irrelevant for seq_len == 1 (kept for docs)
N_LAYERS = 2
EPS = 1e-5            # PyTorch nn.LayerNorm default

# vector-blob row layout (each row is a (1, 128) f32 vector)
_B0, _G1_0, _BE1_0, _BF1_0, _BF2_0, _G2_0, _BE2_0 = range(7)
_BA1, _G1_1, _BE1_1, _BF1_1, _BF2_1, _G2_1, _BE2_1, _BO = range(7, 15)
N_VEC_ROWS = 16       # padded to a multiple of 8 sublanes

# weight-blob slot layout (each slot is a (128, 128) bf16 matrix)
_WA1, _WF1_0, _WF2_0, _WF1_1, _WF2_1, _WO = range(6)


def _round_up(x, m):
    return (x + m - 1) // m * m


def _cdiv(a, b):
    return -(-a // b)


# ----------------------------- kernel ---------------------------------------


def _fused_layer_norm(x, gamma, beta):
    """Single-pass LayerNorm over the real EMBED_DIM=64 features of a 128-lane
    padded row.  Padded lanes (64:128) of x, gamma, beta are exact zeros, so
    they contribute nothing to the sums and remain zero in the output."""
    inv_d = 1.0 / EMBED_DIM
    s = jnp.sum(x, axis=-1, keepdims=True)
    ss = jnp.sum(x * x, axis=-1, keepdims=True)
    mu = s * inv_d
    var = jnp.maximum(ss * inv_d - mu * mu, 0.0)
    return (x - mu) * jax.lax.rsqrt(var + EPS) * gamma + beta


def transformer_kernel(
    x_ref,      # (TB, 64)        f32   batch tile (streamed)
    w0_ref,     # (64, 128)       bf16  input_proj ∘ (I + attn0)   (resident)
    w_ref,      # (6, 128, 128)   bf16  weight blob                (resident)
    v_ref,      # (16, 128)       f32   bias / gamma / beta blob   (resident)
    o_ref,      # (TB, 128)       f32   output tile
):
    cdt = w0_ref.dtype  # MXU operand dtype (bf16)

    def mm(a, w):
        return jnp.dot(a.astype(cdt), w, preferred_element_type=jnp.float32)

    def vrow(i):
        return v_ref[i].reshape(1, D_PAD)

    x = x_ref[...]  # f32 activations throughout; only matmul operands go bf16

    # ---- layer 0: input_proj ∘ (I + attn) pre-folded into one (64,128) matmul
    h = _fused_layer_norm(mm(x, w0_ref[...]) + vrow(_B0),
                          vrow(_G1_0), vrow(_BE1_0))
    ff = jnp.maximum(mm(h, w_ref[_WF1_0]) + vrow(_BF1_0), 0.0)
    ff = mm(ff, w_ref[_WF2_0]) + vrow(_BF2_0)
    h = _fused_layer_norm(h + ff, vrow(_G2_0), vrow(_BE2_0))

    # ---- layer 1: residual identity pre-folded into the attention weight
    h = _fused_layer_norm(mm(h, w_ref[_WA1]) + vrow(_BA1),
                          vrow(_G1_1), vrow(_BE1_1))
    ff = jnp.maximum(mm(h, w_ref[_WF1_1]) + vrow(_BF1_1), 0.0)
    ff = mm(ff, w_ref[_WF2_1]) + vrow(_BF2_1)
    h = _fused_layer_norm(h + ff, vrow(_G2_1), vrow(_BE2_1))

    # ---- output_proj (zero-padded 64 -> 128: unmasked full-width lane store)
    o_ref[...] = (mm(h, w_ref[_WO]) + vrow(_BO)).astype(o_ref.dtype)


# ----------------------------- wrapper ---------------------------------------


def _cost_estimate(b_pad, kparams):
    macs_per_row = EMBED_DIM * D_PAD + 6 * D_PAD * D_PAD       # 7 matmuls
    elem_per_row = 40 * D_PAD                                  # LN / ReLU / bias / residual
    flops = b_pad * (2 * macs_per_row + elem_per_row)
    bytes_accessed = (b_pad * EMBED_DIM * 4 + b_pad * D_PAD * 4
                      + sum(int(p.size) * p.dtype.itemsize for p in kparams))
    return pl.CostEstimate(flops=int(flops),
                           transcendentals=int(4 * b_pad),     # one rsqrt per LN row
                           bytes_accessed=int(bytes_accessed))


@functools.partial(jax.jit, static_argnames=("block_b",))
def transformer_cluster_net(x, kparams, block_b=512):
    """x: (B, EMBED_DIM) f32; kparams: output of prepare_params."""
    w0, w_blob, v_blob = kparams
    b = x.shape[0]

    # Batch tiling: tiles of up to block_b rows (multiple of 8 sublanes).
    # Guarantee >= 2 grid steps when the batch is big enough so v7x's two
    # TensorCores can split the "parallel" axis (v5e/v6e have one TC; the
    # extra step costs only ~0.35 us there).
    b8 = _round_up(max(b, 8), 8)
    n_steps = _cdiv(b8, block_b)
    if n_steps == 1 and b8 >= 32:
        n_steps = 2
    tb = _round_up(_cdiv(b8, n_steps), 8)
    b_pad = tb * n_steps
    if b_pad != b:
        x = jnp.pad(x, ((0, b_pad - b), (0, 0)))

    out = pl.pallas_call(
        transformer_kernel,
        out_shape=jax.ShapeDtypeStruct((b_pad, D_PAD), jnp.float32),
        grid_spec=pltpu.PrefetchScalarGridSpec(
            num_scalar_prefetch=0,
            grid=(n_steps,),
            in_specs=[
                pl.BlockSpec((tb, EMBED_DIM), lambda i: (i, 0)),   # x (streamed)
                pl.BlockSpec(w0.shape, lambda i: (0, 0)),          # resident
                pl.BlockSpec(w_blob.shape, lambda i: (0, 0, 0)),   # resident
                pl.BlockSpec(v_blob.shape, lambda i: (0, 0)),      # resident
            ],
            out_specs=pl.BlockSpec((tb, D_PAD), lambda i: (i, 0)),
        ),
        compiler_params=pltpu.CompilerParams(
            dimension_semantics=("parallel",)),
        cost_estimate=_cost_estimate(b_pad, kparams),
    )(x, w0, w_blob, v_blob)

    return out[:b, :OUTPUT_DIM]


# ------------------------- parameter handling --------------------------------


def init_params(key):
    """Deterministic parameter init; weights already transposed to (in, out)."""
    D, FF, L, OUT = EMBED_DIM, FF_DIM, N_LAYERS, OUTPUT_DIM
    keys = iter(jax.random.split(key, 32))

    def w(shape, scale=0.05):
        return jax.random.normal(next(keys), shape, jnp.float32) * scale

    return (
        w((D, D)),                     # input_proj weight (in, out)
        w((1, D)),                     # input_proj bias
        w((L, D, 3 * D)),              # MHA in_proj weight (in, 3D)
        w((L, 1, 3 * D)),              # MHA in_proj bias
        w((L, D, D)),                  # MHA out_proj weight
        w((L, 1, D)),                  # MHA out_proj bias
        w((L, D, FF)),                 # ffn linear1 weight
        w((L, 1, FF)),                 # ffn linear1 bias
        w((L, FF, D)),                 # ffn linear2 weight
        w((L, 1, D)),                  # ffn linear2 bias
        jnp.ones((L, 1, D), jnp.float32),   # norm1 gamma (PyTorch default)
        jnp.zeros((L, 1, D), jnp.float32),  # norm1 beta
        jnp.ones((L, 1, D), jnp.float32),   # norm2 gamma
        jnp.zeros((L, 1, D), jnp.float32),  # norm2 beta
        w((D, OUT)),                   # output_proj weight
        w((1, OUT)),                   # output_proj bias
    )


def _pad_to(a, rows=None, cols=None):
    """Zero-pad the last (rows) / last (cols) dims of an ndim>=2 array."""
    pr = 0 if rows is None else rows - a.shape[-2]
    pc = 0 if cols is None else cols - a.shape[-1]
    return jnp.pad(a, [(0, 0)] * (a.ndim - 2) + [(0, pr), (0, pc)])


def prepare_params(params, weight_dtype=jnp.bfloat16):
    """Offline (f32) algebraic folds + zero-padding + operand consolidation.

      * seq_len==1 attention == out_proj(V):  Wa = W_v @ W_out, ba = b_v@W_out+b_out
      * residual fold:                        Wa' = I + Wa
      * layer 0 input_proj composition:       W0 = W_in @ Wa'_0,  b0 = b_in @ Wa'_0 + ba_0
      * hidden dim zero-padded 64 -> 128 (gamma/beta padded with zeros)
      * matmul weights cast to bf16, consolidated into one blob; all bias /
        gamma / beta vectors concatenated into one (16,128) f32 blob.
    """
    (inp_w, inp_b, attn_in_w, attn_in_b, attn_out_w, attn_out_b,
     ffn_w1, ffn_b1, ffn_w2, ffn_b2,
     n1_g, n1_b, n2_g, n2_b, outp_w, outp_b) = params
    D, P = EMBED_DIM, D_PAD

    # V-only slice of in_proj (Q/K are dead with seq_len == 1), fold out_proj,
    # then fold the residual identity (all in f32).
    w_v = attn_in_w[:, :, 2 * D:]                                     # (L, D, D)
    b_v = attn_in_b[:, :, 2 * D:]                                     # (L, 1, D)
    wa = jnp.einsum('lij,ljk->lik', w_v, attn_out_w)                  # (L, D, D)
    ba = jnp.einsum('lij,ljk->lik', b_v, attn_out_w) + attn_out_b     # (L, 1, D)
    wa_res = wa + jnp.eye(D, dtype=jnp.float32)[None]                 # I + Wa

    # Layer 0: compose input_proj into the folded attention matmul.
    w0 = inp_w @ wa_res[0]                                            # (D, D)
    b0 = inp_b @ wa_res[0] + ba[0]                                    # (1, D)

    # Zero-pad hidden dim to 128 lanes.
    w0_p = _pad_to(w0, cols=P)                     # (64, 128)
    wa1_p = _pad_to(wa_res[1], rows=P, cols=P)     # (128, 128)
    wf1_p = _pad_to(ffn_w1, rows=P)                # (L, 128, 128)
    wf2_p = _pad_to(ffn_w2, cols=P)                # (L, 128, 128)
    wo_p = _pad_to(outp_w, rows=P, cols=P)         # (128, 128)

    w_blob = jnp.stack(
        [wa1_p, wf1_p[0], wf2_p[0], wf1_p[1], wf2_p[1], wo_p]
    ).astype(weight_dtype)                         # (6, 128, 128)
    w0_p = w0_p.astype(weight_dtype)

    def row(a):
        return _pad_to(a, cols=P)                  # (1, D_any) -> (1, 128)

    v_blob = jnp.concatenate([
        row(b0),
        row(n1_g[0]), row(n1_b[0]), row(ffn_b1[0]), row(ffn_b2[0]),
        row(n2_g[0]), row(n2_b[0]),
        row(ba[1]),
        row(n1_g[1]), row(n1_b[1]), row(ffn_b1[1]), row(ffn_b2[1]),
        row(n2_g[1]), row(n2_b[1]),
        row(outp_b),
        jnp.zeros((N_VEC_ROWS - 15, P), jnp.float32),
    ], axis=0)                                     # (16, 128) f32

    return (w0_p, w_blob, v_blob)


# ----------------------------- reference -------------------------------------


def _layer_norm_ref(x, gamma, beta):
    mu = jnp.mean(x, axis=-1, keepdims=True)
    var = jnp.mean((x - mu) ** 2, axis=-1, keepdims=True)
    return (x - mu) * jax.lax.rsqrt(var + EPS) * gamma + beta


def reference(x, params):
    """Pure-JAX f32 reference mirroring the PyTorch forward (eval mode)."""
    (inp_w, inp_b, attn_in_w, attn_in_b, attn_out_w, attn_out_b,
     ffn_w1, ffn_b1, ffn_w2, ffn_b2,
     n1_g, n1_b, n2_g, n2_b, outp_w, outp_b) = params
    h = x @ inp_w + inp_b
    for l in range(N_LAYERS):
        qkv = h @ attn_in_w[l] + attn_in_b[l]
        v = qkv[:, 2 * EMBED_DIM:]                 # softmax over 1 key == 1
        attn = v @ attn_out_w[l] + attn_out_b[l]
        h = _layer_norm_ref(h + attn, n1_g[l], n1_b[l])
        ff = jnp.maximum(h @ ffn_w1[l] + ffn_b1[l], 0.0) @ ffn_w2[l] + ffn_b2[l]
        h = _layer_norm_ref(h + ff, n2_g[l], n2_b[l])
    return h @ outp_w + outp_b


# ------------------------------- main -----------------------------------------


if __name__ == "__main__":
    key = jax.random.PRNGKey(0)
    k_x, k_p = jax.random.split(key)

    B = 8
    x = jax.random.normal(k_x, (B, EMBED_DIM), jnp.float32)
    params = init_params(k_p)
    kparams = prepare_params(params)   # folded + padded + bf16 matmul weights

    out = transformer_cluster_net(x, kparams)
    out = jax.block_until_ready(out)

    ref = reference(x, params)
    assert out.shape == (B, OUTPUT_DIM)
    max_err = float(jnp.max(jnp.abs(out - ref)))
    # bf16 matmul operands (incl. folded residual) vs f32 reference.
    assert bool(jnp.allclose(out, ref, atol=3e-2, rtol=2e-2)), (
        f"mismatch vs JAX reference (max abs err {max_err})")
    print("KERNEL_OK")
</pallas_src>

<mosaic_0001>
module attributes {stable_mosaic.version = 11 : i64} {
  func.func @transformer_kernel(%arg0: i32, %arg1: memref<8x64xf32, #tpu.memory_space<vmem>>, %arg2: memref<64x128xbf16, #tpu.memory_space<vmem>>, %arg3: memref<6x128x128xbf16, #tpu.memory_space<vmem>>, %arg4: memref<16x128xf32, #tpu.memory_space<vmem>>, %arg5: memref<8x128xf32, #tpu.memory_space<vmem>>) attributes {dimension_semantics = [#tpu.dimension_semantics<parallel>], iteration_bounds = array<i64: 1>, scalar_prefetch = 0 : i64, scratch_operands = 0 : i64, tpu.core_type = #tpu.core_type<tc>, window_params = [{transform_indices = @transform_0, window_bounds = array<i64: 8, 64>}, {pipeline_mode = #tpu.pipeline_mode<synchronous>, transform_indices = @transform_1, window_bounds = array<i64: 64, 128>}, {pipeline_mode = #tpu.pipeline_mode<synchronous>, transform_indices = @transform_2, window_bounds = array<i64: 6, 128, 128>}, {pipeline_mode = #tpu.pipeline_mode<synchronous>, transform_indices = @transform_3, window_bounds = array<i64: 16, 128>}, {transform_indices = @transform_4, window_bounds = array<i64: 8, 128>}]} {
    %c0 = arith.constant 0 : index
    %c0_0 = arith.constant 0 : index
    %0 = vector.load %arg1[%c0, %c0_0] : memref<8x64xf32, #tpu.memory_space<vmem>>, vector<8x64xf32>
    %c0_1 = arith.constant 0 : index
    %c0_2 = arith.constant 0 : index
    %1 = vector.load %arg2[%c0_1, %c0_2] : memref<64x128xbf16, #tpu.memory_space<vmem>>, vector<64x128xbf16>
    %2 = arith.truncf %0 : vector<8x64xf32> to vector<8x64xbf16>
    %cst = arith.constant dense<0.000000e+00> : vector<8x128xf32>
    %3 = tpu.matmul %2, %1, %cst {dimension_numbers = #tpu.dot_dimension_numbers<[1], [0], [0], [1], [0, 0, 1, 1], [], []>} : vector<8x64xbf16>, vector<64x128xbf16>, vector<8x128xf32> -> vector<8x128xf32>
    %c0_3 = arith.constant 0 : index
    %c0_4 = arith.constant 0 : index
    %4 = vector.load %arg4[%c0_3, %c0_4] : memref<16x128xf32, #tpu.memory_space<vmem>>, vector<1x128xf32>
    %5 = vector.shape_cast %4 : vector<1x128xf32> to vector<128xf32>
    %6 = vector.shape_cast %5 : vector<128xf32> to vector<1x128xf32>
    %7 = vector.broadcast %6 : vector<1x128xf32> to vector<8x128xf32>
    %8 = arith.addf %3, %7 : vector<8x128xf32>
    %c1 = arith.constant 1 : index
    %c0_5 = arith.constant 0 : index
    %9 = vector.load %arg4[%c1, %c0_5] : memref<16x128xf32, #tpu.memory_space<vmem>>, vector<1x128xf32>
    %10 = vector.shape_cast %9 : vector<1x128xf32> to vector<128xf32>
    %11 = vector.shape_cast %10 : vector<128xf32> to vector<1x128xf32>
    %c2 = arith.constant 2 : index
    %c0_6 = arith.constant 0 : index
    %12 = vector.load %arg4[%c2, %c0_6] : memref<16x128xf32, #tpu.memory_space<vmem>>, vector<1x128xf32>
    %13 = vector.shape_cast %12 : vector<1x128xf32> to vector<128xf32>
    %14 = vector.shape_cast %13 : vector<128xf32> to vector<1x128xf32>
    %cst_7 = arith.constant dense<0.000000e+00> : vector<8xf32>
    %15 = vector.multi_reduction <add>, %8, %cst_7 [1] : vector<8x128xf32> to vector<8xf32>
    %16 = vector.shape_cast %15 : vector<8xf32> to vector<8x1xf32>
    %17 = arith.mulf %8, %8 : vector<8x128xf32>
    %cst_8 = arith.constant dense<0.000000e+00> : vector<8xf32>
    %18 = vector.multi_reduction <add>, %17, %cst_8 [1] : vector<8x128xf32> to vector<8xf32>
    %19 = vector.shape_cast %18 : vector<8xf32> to vector<8x1xf32>
    %cst_9 = arith.constant 1.562500e-02 : f32
    %20 = vector.broadcast %cst_9 : f32 to vector<8x1xf32>
    %21 = arith.mulf %16, %20 : vector<8x1xf32>
    %cst_10 = arith.constant 1.562500e-02 : f32
    %22 = vector.broadcast %cst_10 : f32 to vector<8x1xf32>
    %23 = arith.mulf %19, %22 : vector<8x1xf32>
    %24 = arith.mulf %21, %21 : vector<8x1xf32>
    %25 = arith.subf %23, %24 : vector<8x1xf32>
    %cst_11 = arith.constant 0.000000e+00 : f32
    %26 = vector.broadcast %cst_11 : f32 to vector<8x1xf32>
    %27 = arith.maximumf %25, %26 : vector<8x1xf32>
    %28 = vector.broadcast %21 : vector<8x1xf32> to vector<8x128xf32>
    %29 = arith.subf %8, %28 : vector<8x128xf32>
    %cst_12 = arith.constant 9.99999974E-6 : f32
    %30 = vector.broadcast %cst_12 : f32 to vector<8x1xf32>
    %31 = arith.addf %27, %30 : vector<8x1xf32>
    %32 = math.rsqrt %31 : vector<8x1xf32>
    %33 = vector.broadcast %32 : vector<8x1xf32> to vector<8x128xf32>
    %34 = arith.mulf %29, %33 : vector<8x128xf32>
    %35 = vector.broadcast %11 : vector<1x128xf32> to vector<8x128xf32>
    %36 = arith.mulf %34, %35 : vector<8x128xf32>
    %37 = vector.broadcast %14 : vector<1x128xf32> to vector<8x128xf32>
    %38 = arith.addf %36, %37 : vector<8x128xf32>
    %c1_13 = arith.constant 1 : index
    %c0_14 = arith.constant 0 : index
    %c0_15 = arith.constant 0 : index
    %39 = vector.load %arg3[%c1_13, %c0_14, %c0_15] : memref<6x128x128xbf16, #tpu.memory_space<vmem>>, vector<1x128x128xbf16>
    %40 = vector.shape_cast %39 : vector<1x128x128xbf16> to vector<128x128xbf16>
    %41 = arith.truncf %38 : vector<8x128xf32> to vector<8x128xbf16>
    %cst_16 = arith.constant dense<0.000000e+00> : vector<8x128xf32>
    %42 = tpu.matmul %41, %40, %cst_16 {dimension_numbers = #tpu.dot_dimension_numbers<[1], [0], [0], [1], [0, 0, 1, 1], [], []>} : vector<8x128xbf16>, vector<128x128xbf16>, vector<8x128xf32> -> vector<8x128xf32>
    %c3 = arith.constant 3 : index
    %c0_17 = arith.constant 0 : index
    %43 = vector.load %arg4[%c3, %c0_17] : memref<16x128xf32, #tpu.memory_space<vmem>>, vector<1x128xf32>
    %44 = vector.shape_cast %43 : vector<1x128xf32> to vector<128xf32>
    %45 = vector.shape_cast %44 : vector<128xf32> to vector<1x128xf32>
    %46 = vector.broadcast %45 : vector<1x128xf32> to vector<8x128xf32>
    %47 = arith.addf %42, %46 : vector<8x128xf32>
    %cst_18 = arith.constant 0.000000e+00 : f32
    %48 = vector.broadcast %cst_18 : f32 to vector<8x128xf32>
    %49 = arith.maximumf %47, %48 : vector<8x128xf32>
    %c2_19 = arith.constant 2 : index
    %c0_20 = arith.constant 0 : index
    %c0_21 = arith.constant 0 : index
    %50 = vector.load %arg3[%c2_19, %c0_20, %c0_21] : memref<6x128x128xbf16, #tpu.memory_space<vmem>>, vector<1x128x128xbf16>
    %51 = vector.shape_cast %50 : vector<1x128x128xbf16> to vector<128x128xbf16>
    %52 = arith.truncf %49 : vector<8x128xf32> to vector<8x128xbf16>
    %cst_22 = arith.constant dense<0.000000e+00> : vector<8x128xf32>
    %53 = tpu.matmul %52, %51, %cst_22 {dimension_numbers = #tpu.dot_dimension_numbers<[1], [0], [0], [1], [0, 0, 1, 1], [], []>} : vector<8x128xbf16>, vector<128x128xbf16>, vector<8x128xf32> -> vector<8x128xf32>
    %c4 = arith.constant 4 : index
    %c0_23 = arith.constant 0 : index
    %54 = vector.load %arg4[%c4, %c0_23] : memref<16x128xf32, #tpu.memory_space<vmem>>, vector<1x128xf32>
    %55 = vector.shape_cast %54 : vector<1x128xf32> to vector<128xf32>
    %56 = vector.shape_cast %55 : vector<128xf32> to vector<1x128xf32>
    %57 = vector.broadcast %56 : vector<1x128xf32> to vector<8x128xf32>
    %58 = arith.addf %53, %57 : vector<8x128xf32>
    %59 = arith.addf %38, %58 : vector<8x128xf32>
    %c5 = arith.constant 5 : index
    %c0_24 = arith.constant 0 : index
    %60 = vector.load %arg4[%c5, %c0_24] : memref<16x128xf32, #tpu.memory_space<vmem>>, vector<1x128xf32>
    %61 = vector.shape_cast %60 : vector<1x128xf32> to vector<128xf32>
    %62 = vector.shape_cast %61 : vector<128xf32> to vector<1x128xf32>
    %c6 = arith.constant 6 : index
    %c0_25 = arith.constant 0 : index
    %63 = vector.load %arg4[%c6, %c0_25] : memref<16x128xf32, #tpu.memory_space<vmem>>, vector<1x128xf32>
    %64 = vector.shape_cast %63 : vector<1x128xf32> to vector<128xf32>
    %65 = vector.shape_cast %64 : vector<128xf32> to vector<1x128xf32>
    %cst_26 = arith.constant dense<0.000000e+00> : vector<8xf32>
    %66 = vector.multi_reduction <add>, %59, %cst_26 [1] : vector<8x128xf32> to vector<8xf32>
    %67 = vector.shape_cast %66 : vector<8xf32> to vector<8x1xf32>
    %68 = arith.mulf %59, %59 : vector<8x128xf32>
    %cst_27 = arith.constant dense<0.000000e+00> : vector<8xf32>
    %69 = vector.multi_reduction <add>, %68, %cst_27 [1] : vector<8x128xf32> to vector<8xf32>
    %70 = vector.shape_cast %69 : vector<8xf32> to vector<8x1xf32>
    %cst_28 = arith.constant 1.562500e-02 : f32
    %71 = vector.broadcast %cst_28 : f32 to vector<8x1xf32>
    %72 = arith.mulf %67, %71 : vector<8x1xf32>
    %cst_29 = arith.constant 1.562500e-02 : f32
    %73 = vector.broadcast %cst_29 : f32 to vector<8x1xf32>
    %74 = arith.mulf %70, %73 : vector<8x1xf32>
    %75 = arith.mulf %72, %72 : vector<8x1xf32>
    %76 = arith.subf %74, %75 : vector<8x1xf32>
    %cst_30 = arith.constant 0.000000e+00 : f32
    %77 = vector.broadcast %cst_30 : f32 to vector<8x1xf32>
    %78 = arith.maximumf %76, %77 : vector<8x1xf32>
    %79 = vector.broadcast %72 : vector<8x1xf32> to vector<8x128xf32>
    %80 = arith.subf %59, %79 : vector<8x128xf32>
    %cst_31 = arith.constant 9.99999974E-6 : f32
    %81 = vector.broadcast %cst_31 : f32 to vector<8x1xf32>
    %82 = arith.addf %78, %81 : vector<8x1xf32>
    %83 = math.rsqrt %82 : vector<8x1xf32>
    %84 = vector.broadcast %83 : vector<8x1xf32> to vector<8x128xf32>
    %85 = arith.mulf %80, %84 : vector<8x128xf32>
    %86 = vector.broadcast %62 : vector<1x128xf32> to vector<8x128xf32>
    %87 = arith.mulf %85, %86 : vector<8x128xf32>
    %88 = vector.broadcast %65 : vector<1x128xf32> to vector<8x128xf32>
    %89 = arith.addf %87, %88 : vector<8x128xf32>
    %c0_32 = arith.constant 0 : index
    %c0_33 = arith.constant 0 : index
    %c0_34 = arith.constant 0 : index
    %90 = vector.load %arg3[%c0_32, %c0_33, %c0_34] : memref<6x128x128xbf16, #tpu.memory_space<vmem>>, vector<1x128x128xbf16>
    %91 = vector.shape_cast %90 : vector<1x128x128xbf16> to vector<128x128xbf16>
    %92 = arith.truncf %89 : vector<8x128xf32> to vector<8x128xbf16>
    %cst_35 = arith.constant dense<0.000000e+00> : vector<8x128xf32>
    %93 = tpu.matmul %92, %91, %cst_35 {dimension_numbers = #tpu.dot_dimension_numbers<[1], [0], [0], [1], [0, 0, 1, 1], [], []>} : vector<8x128xbf16>, vector<128x128xbf16>, vector<8x128xf32> -> vector<8x128xf32>
    %c7 = arith.constant 7 : index
    %c0_36 = arith.constant 0 : index
    %94 = vector.load %arg4[%c7, %c0_36] : memref<16x128xf32, #tpu.memory_space<vmem>>, vector<1x128xf32>
    %95 = vector.shape_cast %94 : vector<1x128xf32> to vector<128xf32>
    %96 = vector.shape_cast %95 : vector<128xf32> to vector<1x128xf32>
    %97 = vector.broadcast %96 : vector<1x128xf32> to vector<8x128xf32>
    %98 = arith.addf %93, %97 : vector<8x128xf32>
    %c8 = arith.constant 8 : index
    %c0_37 = arith.constant 0 : index
    %99 = vector.load %arg4[%c8, %c0_37] : memref<16x128xf32, #tpu.memory_space<vmem>>, vector<1x128xf32>
    %100 = vector.shape_cast %99 : vector<1x128xf32> to vector<128xf32>
    %101 = vector.shape_cast %100 : vector<128xf32> to vector<1x128xf32>
    %c9 = arith.constant 9 : index
    %c0_38 = arith.constant 0 : index
    %102 = vector.load %arg4[%c9, %c0_38] : memref<16x128xf32, #tpu.memory_space<vmem>>, vector<1x128xf32>
    %103 = vector.shape_cast %102 : vector<1x128xf32> to vector<128xf32>
    %104 = vector.shape_cast %103 : vector<128xf32> to vector<1x128xf32>
    %cst_39 = arith.constant dense<0.000000e+00> : vector<8xf32>
    %105 = vector.multi_reduction <add>, %98, %cst_39 [1] : vector<8x128xf32> to vector<8xf32>
    %106 = vector.shape_cast %105 : vector<8xf32> to vector<8x1xf32>
    %107 = arith.mulf %98, %98 : vector<8x128xf32>
    %cst_40 = arith.constant dense<0.000000e+00> : vector<8xf32>
    %108 = vector.multi_reduction <add>, %107, %cst_40 [1] : vector<8x128xf32> to vector<8xf32>
    %109 = vector.shape_cast %108 : vector<8xf32> to vector<8x1xf32>
    %cst_41 = arith.constant 1.562500e-02 : f32
    %110 = vector.broadcast %cst_41 : f32 to vector<8x1xf32>
    %111 = arith.mulf %106, %110 : vector<8x1xf32>
    %cst_42 = arith.constant 1.562500e-02 : f32
    %112 = vector.broadcast %cst_42 : f32 to vector<8x1xf32>
    %113 = arith.mulf %109, %112 : vector<8x1xf32>
    %114 = arith.mulf %111, %111 : vector<8x1xf32>
    %115 = arith.subf %113, %114 : vector<8x1xf32>
    %cst_43 = arith.constant 0.000000e+00 : f32
    %116 = vector.broadcast %cst_43 : f32 to vector<8x1xf32>
    %117 = arith.maximumf %115, %116 : vector<8x1xf32>
    %118 = vector.broadcast %111 : vector<8x1xf32> to vector<8x128xf32>
    %119 = arith.subf %98, %118 : vector<8x128xf32>
    %cst_44 = arith.constant 9.99999974E-6 : f32
    %120 = vector.broadcast %cst_44 : f32 to vector<8x1xf32>
    %121 = arith.addf %117, %120 : vector<8x1xf32>
    %122 = math.rsqrt %121 : vector<8x1xf32>
    %123 = vector.broadcast %122 : vector<8x1xf32> to vector<8x128xf32>
    %124 = arith.mulf %119, %123 : vector<8x128xf32>
    %125 = vector.broadcast %101 : vector<1x128xf32> to vector<8x128xf32>
    %126 = arith.mulf %124, %125 : vector<8x128xf32>
    %127 = vector.broadcast %104 : vector<1x128xf32> to vector<8x128xf32>
    %128 = arith.addf %126, %127 : vector<8x128xf32>
    %c3_45 = arith.constant 3 : index
    %c0_46 = arith.constant 0 : index
    %c0_47 = arith.constant 0 : index
    %129 = vector.load %arg3[%c3_45, %c0_46, %c0_47] : memref<6x128x128xbf16, #tpu.memory_space<vmem>>, vector<1x128x128xbf16>
    %130 = vector.shape_cast %129 : vector<1x128x128xbf16> to vector<128x128xbf16>
    %131 = arith.truncf %128 : vector<8x128xf32> to vector<8x128xbf16>
    %cst_48 = arith.constant dense<0.000000e+00> : vector<8x128xf32>
    %132 = tpu.matmul %131, %130, %cst_48 {dimension_numbers = #tpu.dot_dimension_numbers<[1], [0], [0], [1], [0, 0, 1, 1], [], []>} : vector<8x128xbf16>, vector<128x128xbf16>, vector<8x128xf32> -> vector<8x128xf32>
    %c10 = arith.constant 10 : index
    %c0_49 = arith.constant 0 : index
    %133 = vector.load %arg4[%c10, %c0_49] : memref<16x128xf32, #tpu.memory_space<vmem>>, vector<1x128xf32>
    %134 = vector.shape_cast %133 : vector<1x128xf32> to vector<128xf32>
    %135 = vector.shape_cast %134 : vector<128xf32> to vector<1x128xf32>
    %136 = vector.broadcast %135 : vector<1x128xf32> to vector<8x128xf32>
    %137 = arith.addf %132, %136 : vector<8x128xf32>
    %cst_50 = arith.constant 0.000000e+00 : f32
    %138 = vector.broadcast %cst_50 : f32 to vector<8x128xf32>
    %139 = arith.maximumf %137, %138 : vector<8x128xf32>
    %c4_51 = arith.constant 4 : index
    %c0_52 = arith.constant 0 : index
    %c0_53 = arith.constant 0 : index
    %140 = vector.load %arg3[%c4_51, %c0_52, %c0_53] : memref<6x128x128xbf16, #tpu.memory_space<vmem>>, vector<1x128x128xbf16>
    %141 = vector.shape_cast %140 : vector<1x128x128xbf16> to vector<128x128xbf16>
    %142 = arith.truncf %139 : vector<8x128xf32> to vector<8x128xbf16>
    %cst_54 = arith.constant dense<0.000000e+00> : vector<8x128xf32>
    %143 = tpu.matmul %142, %141, %cst_54 {dimension_numbers = #tpu.dot_dimension_numbers<[1], [0], [0], [1], [0, 0, 1, 1], [], []>} : vector<8x128xbf16>, vector<128x128xbf16>, vector<8x128xf32> -> vector<8x128xf32>
    %c11 = arith.constant 11 : index
    %c0_55 = arith.constant 0 : index
    %144 = vector.load %arg4[%c11, %c0_55] : memref<16x128xf32, #tpu.memory_space<vmem>>, vector<1x128xf32>
    %145 = vector.shape_cast %144 : vector<1x128xf32> to vector<128xf32>
    %146 = vector.shape_cast %145 : vector<128xf32> to vector<1x128xf32>
    %147 = vector.broadcast %146 : vector<1x128xf32> to vector<8x128xf32>
    %148 = arith.addf %143, %147 : vector<8x128xf32>
    %149 = arith.addf %128, %148 : vector<8x128xf32>
    %c12 = arith.constant 12 : index
    %c0_56 = arith.constant 0 : index
    %150 = vector.load %arg4[%c12, %c0_56] : memref<16x128xf32, #tpu.memory_space<vmem>>, vector<1x128xf32>
    %151 = vector.shape_cast %150 : vector<1x128xf32> to vector<128xf32>
    %152 = vector.shape_cast %151 : vector<128xf32> to vector<1x128xf32>
    %c13 = arith.constant 13 : index
    %c0_57 = arith.constant 0 : index
    %153 = vector.load %arg4[%c13, %c0_57] : memref<16x128xf32, #tpu.memory_space<vmem>>, vector<1x128xf32>
    %154 = vector.shape_cast %153 : vector<1x128xf32> to vector<128xf32>
    %155 = vector.shape_cast %154 : vector<128xf32> to vector<1x128xf32>
    %cst_58 = arith.constant dense<0.000000e+00> : vector<8xf32>
    %156 = vector.multi_reduction <add>, %149, %cst_58 [1] : vector<8x128xf32> to vector<8xf32>
    %157 = vector.shape_cast %156 : vector<8xf32> to vector<8x1xf32>
    %158 = arith.mulf %149, %149 : vector<8x128xf32>
    %cst_59 = arith.constant dense<0.000000e+00> : vector<8xf32>
    %159 = vector.multi_reduction <add>, %158, %cst_59 [1] : vector<8x128xf32> to vector<8xf32>
    %160 = vector.shape_cast %159 : vector<8xf32> to vector<8x1xf32>
    %cst_60 = arith.constant 1.562500e-02 : f32
    %161 = vector.broadcast %cst_60 : f32 to vector<8x1xf32>
    %162 = arith.mulf %157, %161 : vector<8x1xf32>
    %cst_61 = arith.constant 1.562500e-02 : f32
    %163 = vector.broadcast %cst_61 : f32 to vector<8x1xf32>
    %164 = arith.mulf %160, %163 : vector<8x1xf32>
    %165 = arith.mulf %162, %162 : vector<8x1xf32>
    %166 = arith.subf %164, %165 : vector<8x1xf32>
    %cst_62 = arith.constant 0.000000e+00 : f32
    %167 = vector.broadcast %cst_62 : f32 to vector<8x1xf32>
    %168 = arith.maximumf %166, %167 : vector<8x1xf32>
    %169 = vector.broadcast %162 : vector<8x1xf32> to vector<8x128xf32>
    %170 = arith.subf %149, %169 : vector<8x128xf32>
    %cst_63 = arith.constant 9.99999974E-6 : f32
    %171 = vector.broadcast %cst_63 : f32 to vector<8x1xf32>
    %172 = arith.addf %168, %171 : vector<8x1xf32>
    %173 = math.rsqrt %172 : vector<8x1xf32>
    %174 = vector.broadcast %173 : vector<8x1xf32> to vector<8x128xf32>
    %175 = arith.mulf %170, %174 : vector<8x128xf32>
    %176 = vector.broadcast %152 : vector<1x128xf32> to vector<8x128xf32>
    %177 = arith.mulf %175, %176 : vector<8x128xf32>
    %178 = vector.broadcast %155 : vector<1x128xf32> to vector<8x128xf32>
    %179 = arith.addf %177, %178 : vector<8x128xf32>
    %c5_64 = arith.constant 5 : index
    %c0_65 = arith.constant 0 : index
    %c0_66 = arith.constant 0 : index
    %180 = vector.load %arg3[%c5_64, %c0_65, %c0_66] : memref<6x128x128xbf16, #tpu.memory_space<vmem>>, vector<1x128x128xbf16>
    %181 = vector.shape_cast %180 : vector<1x128x128xbf16> to vector<128x128xbf16>
    %182 = arith.truncf %179 : vector<8x128xf32> to vector<8x128xbf16>
    %cst_67 = arith.constant dense<0.000000e+00> : vector<8x128xf32>
    %183 = tpu.matmul %182, %181, %cst_67 {dimension_numbers = #tpu.dot_dimension_numbers<[1], [0], [0], [1], [0, 0, 1, 1], [], []>} : vector<8x128xbf16>, vector<128x128xbf16>, vector<8x128xf32> -> vector<8x128xf32>
    %c14 = arith.constant 14 : index
    %c0_68 = arith.constant 0 : index
    %184 = vector.load %arg4[%c14, %c0_68] : memref<16x128xf32, #tpu.memory_space<vmem>>, vector<1x128xf32>
    %185 = vector.shape_cast %184 : vector<1x128xf32> to vector<128xf32>
    %186 = vector.shape_cast %185 : vector<128xf32> to vector<1x128xf32>
    %187 = vector.broadcast %186 : vector<1x128xf32> to vector<8x128xf32>
    %188 = arith.addf %183, %187 : vector<8x128xf32>
    %c0_69 = arith.constant 0 : index
    %c0_70 = arith.constant 0 : index
    %189 = vector.load %arg5[%c0_69, %c0_70] : memref<8x128xf32, #tpu.memory_space<vmem>>, vector<8x128xf32>
    tpu.vector_store %arg5[%c0_69, %c0_70], %188 {strides = array<i32>} : memref<8x128xf32, #tpu.memory_space<vmem>>, vector<8x128xf32>,
    return
  }
  func.func @transform_0(%arg0: i32) -> (i32, i32) {
    %c0_i32 = arith.constant 0 : i32
    %c0_i32_0 = arith.constant 0 : i32
    return %arg0, %c0_i32 : i32, i32
  }
  func.func @transform_1(%arg0: i32) -> (i32, i32) {
    %c0_i32 = arith.constant 0 : i32
    %c0_i32_0 = arith.constant 0 : i32
    %c0_i32_1 = arith.constant 0 : i32
    return %c0_i32, %c0_i32_0 : i32, i32
  }
  func.func @transform_2(%arg0: i32) -> (i32, i32, i32) {
    %c0_i32 = arith.constant 0 : i32
    %c0_i32_0 = arith.constant 0 : i32
    %c0_i32_1 = arith.constant 0 : i32
    %c0_i32_2 = arith.constant 0 : i32
    return %c0_i32, %c0_i32_0, %c0_i32_1 : i32, i32, i32
  }
  func.func @transform_3(%arg0: i32) -> (i32, i32) {
    %c0_i32 = arith.constant 0 : i32
    %c0_i32_0 = arith.constant 0 : i32
    %c0_i32_1 = arith.constant 0 : i32
    return %c0_i32, %c0_i32_0 : i32, i32
  }
  func.func @transform_4(%arg0: i32) -> (i32, i32) {
    %c0_i32 = arith.constant 0 : i32
    %c0_i32_0 = arith.constant 0 : i32
    return %arg0, %c0_i32 : i32, i32
  }
}

</mosaic_0001>

<llo_original>
// kernel: transformer_cluster_net.1
$region0: #{transformer_cluster_net.1}
  #allocation0 [shape = 'u32[]', space=smem, size = 0x4, offset = 0x4, fixed_abs, tag = 'smem constant byte address 0x4 - core index']
  #allocation1 [shape = 'u32[144,128]{1,0:T(1,128)}', space=vmem, size = 0x12000, scoped, tag = 'internal scratch']
  %s0 = inlined_call_operand.hbm [shape: f32[8,64], index: 0, kind: input, shape index: {}]
  %s1 = inlined_call_operand.hbm [shape: bf16[64,128], index: 1, kind: input, shape index: {}]
  %s2 = inlined_call_operand.hbm [shape: bf16[6,128,128], index: 2, kind: input, shape index: {}]
  %s3 = inlined_call_operand.hbm [shape: f32[16,128], index: 3, kind: input, shape index: {}]
  %s4 = inlined_call_operand.hbm [shape: f32[8,128], index: 4, kind: output, shape index: {}]
  %s5 = sld [smem:[#allocation0]]
  $region42: #{transformer_cluster_net.1} parent=0
    _
  %s7 = ssub.s32 1, %s5
  %s8 = scalar_select 0, %s7, %s5
  $region1: #{transformer_cluster_net.1} parent=0
    #allocation2 [shape = 'u8[4096]{0}', space=vmem, size = 0x1000, scoped, tag = 'input window, operand 0, single buffered']
    #allocation3 [shape = 's32[1]{0}', space=sflag, size = 0x4, scoped, tag = 'scoped memory for transformer_cluster_net.1']
    #allocation4 [shape = 's32[1]{0}', space=sflag, size = 0x4, scoped, tag = 'scoped memory for transformer_cluster_net.1']
    #allocation5 [shape = 'u8[16384]{0}', space=vmem, size = 0x4000, scoped, tag = 'input window, operand 1, single buffered']
    #allocation6 [shape = 's32[1]{0}', space=sflag, size = 0x4, scoped, tag = 'scoped memory for transformer_cluster_net.1']
    #allocation7 [shape = 'u8[196608]{0}', space=vmem, size = 0x30000, scoped, tag = 'input window, operand 2, single buffered']
    #allocation8 [shape = 'u8[8192]{0}', space=vmem, size = 0x2000, scoped, tag = 'input window, operand 3, single buffered']
    #allocation9 [shape = 's32[1]{0}', space=sflag, size = 0x4, scoped, tag = 'scoped memory for transformer_cluster_net.1']
    #allocation10 [shape = 'u8[4096]{0}', space=vmem, size = 0x1000, scoped, tag = 'output window, operand 0, single buffered']
    %9 = vsyncpa [#allocation3], 0
    %10 = vsyncpa [#allocation6], 0
    %11 = vsyncpa [#allocation9], 0
    %12 = vsyncpa [#allocation4], 0
    // Predicated region
    $region2: #{transformer_cluster_net.1} parent=1 // pred_check
      _
    $region3: #{transformer_cluster_net.1} parent=1 // pred_check_branch
      %14 = sbr.rel (0) target = $region5
    $region4: #{transformer_cluster_net.1} parent=1 // pred_region
      %s16 = ssub.s32 128, 128
      %17 = vsyncadd [#allocation3], %s16
      %s19 = sshll.u32 [#allocation2], 4
      %s20 = int_to_ptr.vmem [resolvable:$true] %s19
      %22 = dma.hbm_to_vmem [thread:$0]  %s0, 128, %s20, [#allocation3]
    $region5: #{transformer_cluster_net.1} parent=1 // pred_fallthru
      _
    // Predicated region
    $region6: #{transformer_cluster_net.1} parent=1 // pred_check
      _
    $region7: #{transformer_cluster_net.1} parent=1 // pred_check_branch
      %24 = sbr.rel (0) target = $region9
    $region8: #{transformer_cluster_net.1} parent=1 // pred_region
      %s26 = ssub.s32 512, 512
      %27 = vsyncadd [#allocation6], %s26
      %s28 = sshll.u32 [#allocation5], 4
      %s29 = int_to_ptr.vmem [resolvable:$true] %s28
      %34 = dma.hbm_to_vmem [thread:$0]  %s1, 512, %s29, [#allocation6], 64, 64, 4
    $region9: #{transformer_cluster_net.1} parent=1 // pred_fallthru
      _
    // Predicated region
    $region10: #{transformer_cluster_net.1} parent=1 // pred_check
      _
    $region11: #{transformer_cluster_net.1} parent=1 // pred_check_branch
      %36 = sbr.rel (0) target = $region13
    $region12: #{transformer_cluster_net.1} parent=1 // pred_region
      %s38 = ssub.s32 6144, 6144
      %39 = vsyncadd [#allocation6], %s38
      %s40 = sshll.u32 [#allocation7], 4
      %s41 = int_to_ptr.vmem [resolvable:$true] %s40
      %46 = dma.hbm_to_vmem [thread:$0]  %s2, 6144, %s41, [#allocation6], 64, 64, 4
    $region13: #{transformer_cluster_net.1} parent=1 // pred_fallthru
      _
    // Predicated region
    $region14: #{transformer_cluster_net.1} parent=1 // pred_check
      _
    $region15: #{transformer_cluster_net.1} parent=1 // pred_check_branch
      %48 = sbr.rel (0) target = $region17
    $region16: #{transformer_cluster_net.1} parent=1 // pred_region
      %s50 = ssub.s32 256, 256
      %51 = vsyncadd [#allocation9], %s50
      %s52 = sshll.u32 [#allocation8], 4
      %s53 = int_to_ptr.vmem [resolvable:$true] %s52
      %58 = dma.hbm_to_vmem [thread:$0]  %s3, 256, %s53, [#allocation9], 128, 128, 8
    $region17: #{transformer_cluster_net.1} parent=1 // pred_fallthru
      _
    // Predicated region
    $region18: #{transformer_cluster_net.1} parent=1 // pred_check
      _
    $region19: #{transformer_cluster_net.1} parent=1 // pred_check_branch
      %60 = sbr.rel (0) target = $region21
    $region20: #{transformer_cluster_net.1} parent=1 // pred_region
      %61 = dma.done [#allocation3], 128
    $region21: #{transformer_cluster_net.1} parent=1 // pred_fallthru
      _
    // Predicated region
    $region22: #{transformer_cluster_net.1} parent=1 // pred_check
      _
    $region23: #{transformer_cluster_net.1} parent=1 // pred_check_branch
      %63 = sbr.rel (0) target = $region25
    $region24: #{transformer_cluster_net.1} parent=1 // pred_region
      %64 = dma.done [#allocation6], 512
    $region25: #{transformer_cluster_net.1} parent=1 // pred_fallthru
      _
    // Predicated region
    $region26: #{transformer_cluster_net.1} parent=1 // pred_check
      _
    $region27: #{transformer_cluster_net.1} parent=1 // pred_check_branch
      %66 = sbr.rel (0) target = $region29
    $region28: #{transformer_cluster_net.1} parent=1 // pred_region
      %67 = dma.done [#allocation6], 6144
    $region29: #{transformer_cluster_net.1} parent=1 // pred_fallthru
      _
    // Predicated region
    $region30: #{transformer_cluster_net.1} parent=1 // pred_check
      _
    $region31: #{transformer_cluster_net.1} parent=1 // pred_check_branch
      %69 = sbr.rel (0) target = $region33
    $region32: #{transformer_cluster_net.1} parent=1 // pred_region
      %70 = dma.done [#allocation9], 256
    $region33: #{transformer_cluster_net.1} parent=1 // pred_fallthru
      _
    %v72 = vld [vmem:[#allocation2] sm:$0xff]
    %v73 = vld [vmem:[#allocation5] sm:$0xf]
    %v74 = vld [vmem:[#allocation5 + $0x4] sm:$0xf]
    %v75 = vld [vmem:[#allocation5 + $0x8] sm:$0xf]
    %v76 = vld [vmem:[#allocation5 + $0xc] sm:$0xf]
    %v77 = vld [vmem:[#allocation5 + $0x10] sm:$0xf]
    %v78 = vld [vmem:[#allocation5 + $0x14] sm:$0xf]
    %v79 = vld [vmem:[#allocation5 + $0x18] sm:$0xf]
    %v80 = vld [vmem:[#allocation5 + $0x1c] sm:$0xf]
    %v81 = vpack.c.bf16 %v72, %v72
    %v82 = vld [vmem:[#allocation8] sm:$0x1]
    %v83 = vlaneseq
    %v84 = vshrl.u32 %v83, 7
    %v85 = vsub.s32 0, %v84
    %v86 = vrot.slane %v82, %v85
    %v95 = vunpack.c.l.b16 %v73
    %v96 = vunpack.c.l.b16 %v74
    %v97 = vunpack.c.l.b16 %v75
    %v98 = vunpack.c.l.b16 %v76
    %v99 = vunpack.c.l.b16 %v77
    %v100 = vunpack.c.l.b16 %v78
    %v101 = vunpack.c.l.b16 %v79
    %v102 = vunpack.c.l.b16 %v80
    %v103 = vpack.c.b16 %v96, %v95
    %v104 = vpack.c.b16 %v98, %v97
    %v105 = vpack.c.b16 %v100, %v99
    %v106 = vpack.c.b16 %v102, %v101
    %vm111 = vcmask 523264
    %v113 = vsel %vm111, %v81, 0
    %115 = vmatprep.subr.bf16.mxu0 0
    %116 = vmatpush1.bf16.msra.mxu0 0
    %117 = vmatprep.subr.bf16.mxu0 0
    %118 = vmatpush1.bf16.msra.mxu0 0
    %119 = vmatprep.subr.bf16.mxu0 0
    %120 = vmatpush1.bf16.msra.mxu0 0
    %121 = vmatprep.subr.bf16.mxu0 0
    %122 = vmatpush1.bf16.msra.mxu0 0
    %123 = vmatprep.subr.bf16.mxu0 0
    %124 = vmatpush1.bf16.msra.mxu0 %v106
    %125 = vmatprep.subr.bf16.mxu0 0
    %126 = vmatpush1.bf16.msra.mxu0 %v105
    %127 = vmatprep.subr.bf16.mxu0 0
    %128 = vmatpush1.bf16.msra.mxu0 %v104
    %129 = vmatprep.subr.bf16.mxu0 0
    %130 = vmatpush1.bf16.msra.mxu0 %v103
    %131 = vmatprep.subr.bf16.mxu0 0
    %132 = vmatpush2.bf16.msra.mxu0 0
    %133 = vmatprep.subr.bf16.mxu0 0
    %134 = vmatpush2.bf16.msra.mxu0 0
    %135 = vmatprep.subr.bf16.mxu0 0
    %136 = vmatpush2.bf16.msra.mxu0 0
    %137 = vmatprep.subr.bf16.mxu0 0
    %138 = vmatpush2.bf16.msra.mxu0 0
    %139 = vmatprep.subr.bf16.mxu0 0
    %140 = vmatpush2.bf16.msra.mxu0 0
    %141 = vmatprep.subr.bf16.mxu0 0
    %142 = vmatpush2.bf16.msra.mxu0 0
    %143 = vmatprep.subr.bf16.mxu0 0
    %144 = vmatpush2.bf16.msra.mxu0 0
    %145 = vmatprep.subr.bf16.mxu0 0
    %146 = vmatpush2.bf16.msra.mxu0 0
    %147 = vmatprep.mubr.bf16.mxu0 0
    %148 = vmatmul.mubr.bf16.gmra.mxu0 %v113
    %v149 = vpop.f32.mrf.mxu0
    %v150 = vadd.f32 %v86, %v149
    %v151 = vpop.f32.mrf.mxu0
    %v152 = vpop.f32.mrf.mxu0
    %v153 = vpop.f32.mrf.mxu0
    %154 = vdwg.mxu0
    %v155 = vld [vmem:[#allocation8 + $0x1] sm:$0x1]
    %v156 = vld [vmem:[#allocation8 + $0x2] sm:$0x1]
    %157 = vadd.xlane.f32.xlu0 %v150
    %v158 = vpop.xlane.xlu0 %157
    %v159 = vmul.f32 %v150, %v150
    %160 = vadd.xlane.f32.xlu0 %v159
    %v161 = vpop.xlane.xlu0 %160
    %v162 = vmul.f32 %v158, 0.015625
    %v163 = vmul.f32 %v161, 0.015625
    %v164 = vmul.f32 %v162, %v162
    %v165 = vsub.f32 %v163, %v164
    %v166 = vmax.f32 %v165, 0.0
    %v167 = vsub.f32 %v150, %v162
    %v168 = vadd.f32 %v166, 1e-05
    %v169 = vrsqrt.pop %v168
    %v170 = vmul.f32 %v167, %v169
    %v171 = vlaneseq
    %v172 = vshrl.u32 %v171, 7
    %v173 = vsub.s32 0, %v172
    %v174 = vrot.slane %v155, %v173
    %v175 = vmul.f32 %v170, %v174
    %v176 = vlaneseq
    %v177 = vshrl.u32 %v176, 7
    %v178 = vsub.s32 0, %v177
    %v179 = vrot.slane %v156, %v178
    %v180 = vadd.f32 %v175, %v179
    %s181 = scalar_lea.vmem [#allocation7], 64
    %v182 = vld [vmem:[%s181] sm:$0xf]
    %v183 = vld [vmem:[%s181 + $0x4] sm:$0xf]
    %v184 = vld [vmem:[%s181 + $0x8] sm:$0xf]
    %v185 = vld [vmem:[%s181 + $0xc] sm:$0xf]
    %v186 = vld [vmem:[%s181 + $0x10] sm:$0xf]
    %v187 = vld [vmem:[%s181 + $0x14] sm:$0xf]
    %v188 = vld [vmem:[%s181 + $0x18] sm:$0xf]
    %v189 = vld [vmem:[%s181 + $0x1c] sm:$0xf]
    %v190 = vld [vmem:[%s181 + $0x20] sm:$0xf]
    %v191 = vld [vmem:[%s181 + $0x24] sm:$0xf]
    %v192 = vld [vmem:[%s181 + $0x28] sm:$0xf]
    %v193 = vld [vmem:[%s181 + $0x2c] sm:$0xf]
    %v194 = vld [vmem:[%s181 + $0x30] sm:$0xf]
    %v195 = vld [vmem:[%s181 + $0x34] sm:$0xf]
    %v196 = vld [vmem:[%s181 + $0x38] sm:$0xf]
    %v197 = vld [vmem:[%s181 + $0x3c] sm:$0xf]
    %v198 = vpack.c.bf16 %v180, %v180
    %v199 = vld [vmem:[#allocation8 + $0x3] sm:$0x1]
    %v200 = vlaneseq
    %v201 = vshrl.u32 %v200, 7
    %v202 = vsub.s32 0, %v201
    %v203 = vrot.slane %v199, %v202
    %v220 = vunpack.c.l.b16 %v182
    %v221 = vunpack.c.l.b16 %v183
    %v222 = vunpack.c.l.b16 %v184
    %v223 = vunpack.c.l.b16 %v185
    %v224 = vunpack.c.l.b16 %v186
    %v225 = vunpack.c.l.b16 %v187
    %v226 = vunpack.c.l.b16 %v188
    %v227 = vunpack.c.l.b16 %v189
    %v228 = vunpack.c.l.b16 %v190
    %v229 = vunpack.c.l.b16 %v191
    %v230 = vunpack.c.l.b16 %v192
    %v231 = vunpack.c.l.b16 %v193
    %v232 = vunpack.c.l.b16 %v194
    %v233 = vunpack.c.l.b16 %v195
    %v234 = vunpack.c.l.b16 %v196
    %v235 = vunpack.c.l.b16 %v197
    %v236 = vpack.c.b16 %v221, %v220
    %v237 = vpack.c.b16 %v223, %v222
    %v238 = vpack.c.b16 %v225, %v224
    %v239 = vpack.c.b16 %v227, %v226
    %v240 = vpack.c.b16 %v229, %v228
    %v241 = vpack.c.b16 %v231, %v230
    %v242 = vpack.c.b16 %v233, %v232
    %v243 = vpack.c.b16 %v235, %v234
    %252 = vmatprep.subr.bf16.mxu0 0
    %253 = vmatpush1.bf16.msra.mxu0 %v243
    %254 = vmatprep.subr.bf16.mxu0 0
    %255 = vmatpush1.bf16.msra.mxu0 %v242
    %256 = vmatprep.subr.bf16.mxu0 0
    %257 = vmatpush1.bf16.msra.mxu0 %v241
    %258 = vmatprep.subr.bf16.mxu0 0
    %259 = vmatpush1.bf16.msra.mxu0 %v240
    %260 = vmatprep.subr.bf16.mxu0 0
    %261 = vmatpush1.bf16.msra.mxu0 %v239
    %262 = vmatprep.subr.bf16.mxu0 0
    %263 = vmatpush1.bf16.msra.mxu0 %v238
    %264 = vmatprep.subr.bf16.mxu0 0
    %265 = vmatpush1.bf16.msra.mxu0 %v237
    %266 = vmatprep.subr.bf16.mxu0 0
    %267 = vmatpush1.bf16.msra.mxu0 %v236
    %268 = vmatprep.subr.bf16.mxu0 0
    %269 = vmatpush2.bf16.msra.mxu0 0
    %270 = vmatprep.subr.bf16.mxu0 0
    %271 = vmatpush2.bf16.msra.mxu0 0
    %272 = vmatprep.subr.bf16.mxu0 0
    %273 = vmatpush2.bf16.msra.mxu0 0
    %274 = vmatprep.subr.bf16.mxu0 0
    %275 = vmatpush2.bf16.msra.mxu0 0
    %276 = vmatprep.subr.bf16.mxu0 0
    %277 = vmatpush2.bf16.msra.mxu0 0
    %278 = vmatprep.subr.bf16.mxu0 0
    %279 = vmatpush2.bf16.msra.mxu0 0
    %280 = vmatprep.subr.bf16.mxu0 0
    %281 = vmatpush2.bf16.msra.mxu0 0
    %282 = vmatprep.subr.bf16.mxu0 0
    %283 = vmatpush2.bf16.msra.mxu0 0
    %284 = vmatprep.mubr.bf16.mxu0 0
    %285 = vmatmul.mubr.bf16.gmra.mxu0 %v198
    %v286 = vpop.f32.mrf.mxu0
    %v287 = vadd.f32 %v203, %v286
    %v288 = vpop.f32.mrf.mxu0
    %v289 = vpop.f32.mrf.mxu0
    %v290 = vpop.f32.mrf.mxu0
    %291 = vdwg.mxu0
    %v292 = vmax.f32 %v287, 0.0
    %s293 = scalar_lea.vmem [#allocation7], 128
    %v294 = vld [vmem:[%s293] sm:$0xf]
    %v295 = vld [vmem:[%s293 + $0x4] sm:$0xf]
    %v296 = vld [vmem:[%s293 + $0x8] sm:$0xf]
    %v297 = vld [vmem:[%s293 + $0xc] sm:$0xf]
    %v298 = vld [vmem:[%s293 + $0x10] sm:$0xf]
    %v299 = vld [vmem:[%s293 + $0x14] sm:$0xf]
    %v300 = vld [vmem:[%s293 + $0x18] sm:$0xf]
    %v301 = vld [vmem:[%s293 + $0x1c] sm:$0xf]
    %v302 = vld [vmem:[%s293 + $0x20] sm:$0xf]
    %v303 = vld [vmem:[%s293 + $0x24] sm:$0xf]
    %v304 = vld [vmem:[%s293 + $0x28] sm:$0xf]
    %v305 = vld [vmem:[%s293 + $0x2c] sm:$0xf]
    %v306 = vld [vmem:[%s293 + $0x30] sm:$0xf]
    %v307 = vld [vmem:[%s293 + $0x34] sm:$0xf]
    %v308 = vld [vmem:[%s293 + $0x38] sm:$0xf]
    %v309 = vld [vmem:[%s293 + $0x3c] sm:$0xf]
    %v310 = vpack.c.bf16 %v292, %v292
    %v311 = vld [vmem:[#allocation8 + $0x4] sm:$0x1]
    %v312 = vlaneseq
    %v313 = vshrl.u32 %v312, 7
    %v314 = vsub.s32 0, %v313
    %v315 = vrot.slane %v311, %v314
    %v332 = vunpack.c.l.b16 %v294
    %v333 = vunpack.c.l.b16 %v295
    %v334 = vunpack.c.l.b16 %v296
    %v335 = vunpack.c.l.b16 %v297
    %v336 = vunpack.c.l.b16 %v298
    %v337 = vunpack.c.l.b16 %v299
    %v338 = vunpack.c.l.b16 %v300
    %v339 = vunpack.c.l.b16 %v301
    %v340 = vunpack.c.l.b16 %v302
    %v341 = vunpack.c.l.b16 %v303
    %v342 = vunpack.c.l.b16 %v304
    %v343 = vunpack.c.l.b16 %v305
    %v344 = vunpack.c.l.b16 %v306
    %v345 = vunpack.c.l.b16 %v307
    %v346 = vunpack.c.l.b16 %v308
    %v347 = vunpack.c.l.b16 %v309
    %v348 = vpack.c.b16 %v333, %v332
    %v349 = vpack.c.b16 %v335, %v334
    %v350 = vpack.c.b16 %v337, %v336
    %v351 = vpack.c.b16 %v339, %v338
    %v352 = vpack.c.b16 %v341, %v340
    %v353 = vpack.c.b16 %v343, %v342
    %v354 = vpack.c.b16 %v345, %v344
    %v355 = vpack.c.b16 %v347, %v346
    %364 = vmatprep.subr.bf16.mxu0 0
    %365 = vmatpush1.bf16.msra.mxu0 %v355
    %366 = vmatprep.subr.bf16.mxu0 0
    %367 = vmatpush1.bf16.msra.mxu0 %v354
    %368 = vmatprep.subr.bf16.mxu0 0
    %369 = vmatpush1.bf16.msra.mxu0 %v353
    %370 = vmatprep.subr.bf16.mxu0 0
    %371 = vmatpush1.bf16.msra.mxu0 %v352
    %372 = vmatprep.subr.bf16.mxu0 0
    %373 = vmatpush1.bf16.msra.mxu0 %v351
    %374 = vmatprep.subr.bf16.mxu0 0
    %375 = vmatpush1.bf16.msra.mxu0 %v350
    %376 = vmatprep.subr.bf16.mxu0 0
    %377 = vmatpush1.bf16.msra.mxu0 %v349
    %378 = vmatprep.subr.bf16.mxu0 0
    %379 = vmatpush1.bf16.msra.mxu0 %v348
    %380 = vmatprep.subr.bf16.mxu0 0
    %381 = vmatpush2.bf16.msra.mxu0 0
    %382 = vmatprep.subr.bf16.mxu0 0
    %383 = vmatpush2.bf16.msra.mxu0 0
    %384 = vmatprep.subr.bf16.mxu0 0
    %385 = vmatpush2.bf16.msra.mxu0 0
    %386 = vmatprep.subr.bf16.mxu0 0
    %387 = vmatpush2.bf16.msra.mxu0 0
    %388 = vmatprep.subr.bf16.mxu0 0
    %389 = vmatpush2.bf16.msra.mxu0 0
    %390 = vmatprep.subr.bf16.mxu0 0
    %391 = vmatpush2.bf16.msra.mxu0 0
    %392 = vmatprep.subr.bf16.mxu0 0
    %393 = vmatpush2.bf16.msra.mxu0 0
    %394 = vmatprep.subr.bf16.mxu0 0
    %395 = vmatpush2.bf16.msra.mxu0 0
    %396 = vmatprep.mubr.bf16.mxu0 0
    %397 = vmatmul.mubr.bf16.gmra.mxu0 %v310
    %v398 = vpop.f32.mrf.mxu0
    %v399 = vadd.f32 %v315, %v398
    %v400 = vpop.f32.mrf.mxu0
    %v401 = vpop.f32.mrf.mxu0
    %v402 = vpop.f32.mrf.mxu0
    %403 = vdwg.mxu0
    %v404 = vadd.f32 %v180, %v399
    %v405 = vld [vmem:[#allocation8 + $0x5] sm:$0x1]
    %v406 = vld [vmem:[#allocation8 + $0x6] sm:$0x1]
    %407 = vadd.xlane.f32.xlu0 %v404
    %v408 = vpop.xlane.xlu0 %407
    %v409 = vmul.f32 %v404, %v404
    %410 = vadd.xlane.f32.xlu0 %v409
    %v411 = vpop.xlane.xlu0 %410
    %v412 = vmul.f32 %v408, 0.015625
    %v413 = vmul.f32 %v411, 0.015625
    %v414 = vmul.f32 %v412, %v412
    %v415 = vsub.f32 %v413, %v414
    %v416 = vmax.f32 %v415, 0.0
    %v417 = vsub.f32 %v404, %v412
    %v418 = vadd.f32 %v416, 1e-05
    %v419 = vrsqrt.pop %v418
    %v420 = vmul.f32 %v417, %v419
    %v421 = vlaneseq
    %v422 = vshrl.u32 %v421, 7
    %v423 = vsub.s32 0, %v422
    %v424 = vrot.slane %v405, %v423
    %v425 = vmul.f32 %v420, %v424
    %v426 = vlaneseq
    %v427 = vshrl.u32 %v426, 7
    %v428 = vsub.s32 0, %v427
    %v429 = vrot.slane %v406, %v428
    %v430 = vadd.f32 %v425, %v429
    %v431 = vld [vmem:[#allocation7] sm:$0xf]
    %v432 = vld [vmem:[#allocation7 + $0x4] sm:$0xf]
    %v433 = vld [vmem:[#allocation7 + $0x8] sm:$0xf]
    %v434 = vld [vmem:[#allocation7 + $0xc] sm:$0xf]
    %v435 = vld [vmem:[#allocation7 + $0x10] sm:$0xf]
    %v436 = vld [vmem:[#allocation7 + $0x14] sm:$0xf]
    %v437 = vld [vmem:[#allocation7 + $0x18] sm:$0xf]
    %v438 = vld [vmem:[#allocation7 + $0x1c] sm:$0xf]
    %v439 = vld [vmem:[#allocation7 + $0x20] sm:$0xf]
    %v440 = vld [vmem:[#allocation7 + $0x24] sm:$0xf]
    %v441 = vld [vmem:[#allocation7 + $0x28] sm:$0xf]
    %v442 = vld [vmem:[#allocation7 + $0x2c] sm:$0xf]
    %v443 = vld [vmem:[#allocation7 + $0x30] sm:$0xf]
    %v444 = vld [vmem:[#allocation7 + $0x34] sm:$0xf]
    %v445 = vld [vmem:[#allocation7 + $0x38] sm:$0xf]
    %v446 = vld [vmem:[#allocation7 + $0x3c] sm:$0xf]
    %v447 = vpack.c.bf16 %v430, %v430
    %v448 = vld [vmem:[#allocation8 + $0x7] sm:$0x1]
    %v449 = vlaneseq
    %v450 = vshrl.u32 %v449, 7
    %v451 = vsub.s32 0, %v450
    %v452 = vrot.slane %v448, %v451
    %v469 = vunpack.c.l.b16 %v431
    %v470 = vunpack.c.l.b16 %v432
    %v471 = vunpack.c.l.b16 %v433
    %v472 = vunpack.c.l.b16 %v434
    %v473 = vunpack.c.l.b16 %v435
    %v474 = vunpack.c.l.b16 %v436
    %v475 = vunpack.c.l.b16 %v437
    %v476 = vunpack.c.l.b16 %v438
    %v477 = vunpack.c.l.b16 %v439
    %v478 = vunpack.c.l.b16 %v440
    %v479 = vunpack.c.l.b16 %v441
    %v480 = vunpack.c.l.b16 %v442
    %v481 = vunpack.c.l.b16 %v443
    %v482 = vunpack.c.l.b16 %v444
    %v483 = vunpack.c.l.b16 %v445
    %v484 = vunpack.c.l.b16 %v446
    %v485 = vpack.c.b16 %v470, %v469
    %v486 = vpack.c.b16 %v472, %v471
    %v487 = vpack.c.b16 %v474, %v473
    %v488 = vpack.c.b16 %v476, %v475
    %v489 = vpack.c.b16 %v478, %v477
    %v490 = vpack.c.b16 %v480, %v479
    %v491 = vpack.c.b16 %v482, %v481
    %v492 = vpack.c.b16 %v484, %v483
    %501 = vmatprep.subr.bf16.mxu0 0
    %502 = vmatpush1.bf16.msra.mxu0 %v492
    %503 = vmatprep.subr.bf16.mxu0 0
    %504 = vmatpush1.bf16.msra.mxu0 %v491
    %505 = vmatprep.subr.bf16.mxu0 0
    %506 = vmatpush1.bf16.msra.mxu0 %v490
    %507 = vmatprep.subr.bf16.mxu0 0
    %508 = vmatpush1.bf16.msra.mxu0 %v489
    %509 = vmatprep.subr.bf16.mxu0 0
    %510 = vmatpush1.bf16.msra.mxu0 %v488
    %511 = vmatprep.subr.bf16.mxu0 0
    %512 = vmatpush1.bf16.msra.mxu0 %v487
    %513 = vmatprep.subr.bf16.mxu0 0
    %514 = vmatpush1.bf16.msra.mxu0 %v486
    %515 = vmatprep.subr.bf16.mxu0 0
    %516 = vmatpush1.bf16.msra.mxu0 %v485
    %517 = vmatprep.subr.bf16.mxu0 0
    %518 = vmatpush2.bf16.msra.mxu0 0
    %519 = vmatprep.subr.bf16.mxu0 0
    %520 = vmatpush2.bf16.msra.mxu0 0
    %521 = vmatprep.subr.bf16.mxu0 0
    %522 = vmatpush2.bf16.msra.mxu0 0
    %523 = vmatprep.subr.bf16.mxu0 0
    %524 = vmatpush2.bf16.msra.mxu0 0
    %525 = vmatprep.subr.bf16.mxu0 0
    %526 = vmatpush2.bf16.msra.mxu0 0
    %527 = vmatprep.subr.bf16.mxu0 0
    %528 = vmatpush2.bf16.msra.mxu0 0
    %529 = vmatprep.subr.bf16.mxu0 0
    %530 = vmatpush2.bf16.msra.mxu0 0
    %531 = vmatprep.subr.bf16.mxu0 0
    %532 = vmatpush2.bf16.msra.mxu0 0
    %533 = vmatprep.mubr.bf16.mxu0 0
    %534 = vmatmul.mubr.bf16.gmra.mxu0 %v447
    %v535 = vpop.f32.mrf.mxu0
    %v536 = vadd.f32 %v452, %v535
    %v537 = vpop.f32.mrf.mxu0
    %v538 = vpop.f32.mrf.mxu0
    %v539 = vpop.f32.mrf.mxu0
    %540 = vdwg.mxu0
    %v541 = vld [vmem:[#allocation8 + $0x8] sm:$0x1]
    %v542 = vld [vmem:[#allocation8 + $0x9] sm:$0x1]
    %543 = vadd.xlane.f32.xlu0 %v536
    %v544 = vpop.xlane.xlu0 %543
    %v545 = vmul.f32 %v536, %v536
    %546 = vadd.xlane.f32.xlu0 %v545
    %v547 = vpop.xlane.xlu0 %546
    %v548 = vmul.f32 %v544, 0.015625
    %v549 = vmul.f32 %v547, 0.015625
    %v550 = vmul.f32 %v548, %v548
    %v551 = vsub.f32 %v549, %v550
    %v552 = vmax.f32 %v551, 0.0
    %v553 = vsub.f32 %v536, %v548
    %v554 = vadd.f32 %v552, 1e-05
    %v555 = vrsqrt.pop %v554
    %v556 = vmul.f32 %v553, %v555
    %v557 = vlaneseq
    %v558 = vshrl.u32 %v557, 7
    %v559 = vsub.s32 0, %v558
    %v560 = vrot.slane %v541, %v559
    %v561 = vmul.f32 %v556, %v560
    %v562 = vlaneseq
    %v563 = vshrl.u32 %v562, 7
    %v564 = vsub.s32 0, %v563
    %v565 = vrot.slane %v542, %v564
    %v566 = vadd.f32 %v561, %v565
    %s567 = scalar_lea.vmem [#allocation7], 192
    %v568 = vld [vmem:[%s567] sm:$0xf]
    %v569 = vld [vmem:[%s567 + $0x4] sm:$0xf]
    %v570 = vld [vmem:[%s567 + $0x8] sm:$0xf]
    %v571 = vld [vmem:[%s567 + $0xc] sm:$0xf]
    %v572 = vld [vmem:[%s567 + $0x10] sm:$0xf]
    %v573 = vld [vmem:[%s567 + $0x14] sm:$0xf]
    %v574 = vld [vmem:[%s567 + $0x18] sm:$0xf]
    %v575 = vld [vmem:[%s567 + $0x1c] sm:$0xf]
    %v576 = vld [vmem:[%s567 + $0x20] sm:$0xf]
    %v577 = vld [vmem:[%s567 + $0x24] sm:$0xf]
    %v578 = vld [vmem:[%s567 + $0x28] sm:$0xf]
    %v579 = vld [vmem:[%s567 + $0x2c] sm:$0xf]
    %v580 = vld [vmem:[%s567 + $0x30] sm:$0xf]
    %v581 = vld [vmem:[%s567 + $0x34] sm:$0xf]
    %v582 = vld [vmem:[%s567 + $0x38] sm:$0xf]
    %v583 = vld [vmem:[%s567 + $0x3c] sm:$0xf]
    %v584 = vpack.c.bf16 %v566, %v566
    %v585 = vld [vmem:[#allocation8 + $0xa] sm:$0x1]
    %v586 = vlaneseq
    %v587 = vshrl.u32 %v586, 7
    %v588 = vsub.s32 0, %v587
    %v589 = vrot.slane %v585, %v588
    %v606 = vunpack.c.l.b16 %v568
    %v607 = vunpack.c.l.b16 %v569
    %v608 = vunpack.c.l.b16 %v570
    %v609 = vunpack.c.l.b16 %v571
    %v610 = vunpack.c.l.b16 %v572
    %v611 = vunpack.c.l.b16 %v573
    %v612 = vunpack.c.l.b16 %v574
    %v613 = vunpack.c.l.b16 %v575
    %v614 = vunpack.c.l.b16 %v576
    %v615 = vunpack.c.l.b16 %v577
    %v616 = vunpack.c.l.b16 %v578
    %v617 = vunpack.c.l.b16 %v579
    %v618 = vunpack.c.l.b16 %v580
    %v619 = vunpack.c.l.b16 %v581
    %v620 = vunpack.c.l.b16 %v582
    %v621 = vunpack.c.l.b16 %v583
    %v622 = vpack.c.b16 %v607, %v606
    %v623 = vpack.c.b16 %v609, %v608
    %v624 = vpack.c.b16 %v611, %v610
    %v625 = vpack.c.b16 %v613, %v612
    %v626 = vpack.c.b16 %v615, %v614
    %v627 = vpack.c.b16 %v617, %v616
    %v628 = vpack.c.b16 %v619, %v618
    %v629 = vpack.c.b16 %v621, %v620
    %638 = vmatprep.subr.bf16.mxu0 0
    %639 = vmatpush1.bf16.msra.mxu0 %v629
    %640 = vmatprep.subr.bf16.mxu0 0
    %641 = vmatpush1.bf16.msra.mxu0 %v628
    %642 = vmatprep.subr.bf16.mxu0 0
    %643 = vmatpush1.bf16.msra.mxu0 %v627
    %644 = vmatprep.subr.bf16.mxu0 0
    %645 = vmatpush1.bf16.msra.mxu0 %v626
    %646 = vmatprep.subr.bf16.mxu0 0
    %647 = vmatpush1.bf16.msra.mxu0 %v625
    %648 = vmatprep.subr.bf16.mxu0 0
    %649 = vmatpush1.bf16.msra.mxu0 %v624
    %650 = vmatprep.subr.bf16.mxu0 0
    %651 = vmatpush1.bf16.msra.mxu0 %v623
    %652 = vmatprep.subr.bf16.mxu0 0
    %653 = vmatpush1.bf16.msra.mxu0 %v622
    %654 = vmatprep.subr.bf16.mxu0 0
    %655 = vmatpush2.bf16.msra.mxu0 0
    %656 = vmatprep.subr.bf16.mxu0 0
    %657 = vmatpush2.bf16.msra.mxu0 0
    %658 = vmatprep.subr.bf16.mxu0 0
    %659 = vmatpush2.bf16.msra.mxu0 0
    %660 = vmatprep.subr.bf16.mxu0 0
    %661 = vmatpush2.bf16.msra.mxu0 0
    %662 = vmatprep.subr.bf16.mxu0 0
    %663 = vmatpush2.bf16.msra.mxu0 0
    %664 = vmatprep.subr.bf16.mxu0 0
    %665 = vmatpush2.bf16.msra.mxu0 0
    %666 = vmatprep.subr.bf16.mxu0 0
    %667 = vmatpush2.bf16.msra.mxu0 0
    %668 = vmatprep.subr.bf16.mxu0 0
    %669 = vmatpush2.bf16.msra.mxu0 0
    %670 = vmatprep.mubr.bf16.mxu0 0
    %671 = vmatmul.mubr.bf16.gmra.mxu0 %v584
    %v672 = vpop.f32.mrf.mxu0
    %v673 = vadd.f32 %v589, %v672
    %v674 = vpop.f32.mrf.mxu0
    %v675 = vpop.f32.mrf.mxu0
    %v676 = vpop.f32.mrf.mxu0
    %677 = vdwg.mxu0
    %v678 = vmax.f32 %v673, 0.0
    %s679 = scalar_lea.vmem [#allocation7], 256
    %v680 = vld [vmem:[%s679] sm:$0xf]
    %v681 = vld [vmem:[%s679 + $0x4] sm:$0xf]
    %v682 = vld [vmem:[%s679 + $0x8] sm:$0xf]
    %v683 = vld [vmem:[%s679 + $0xc] sm:$0xf]
    %v684 = vld [vmem:[%s679 + $0x10] sm:$0xf]
    %v685 = vld [vmem:[%s679 + $0x14] sm:$0xf]
    %v686 = vld [vmem:[%s679 + $0x18] sm:$0xf]
    %v687 = vld [vmem:[%s679 + $0x1c] sm:$0xf]
    %v688 = vld [vmem:[%s679 + $0x20] sm:$0xf]
    %v689 = vld [vmem:[%s679 + $0x24] sm:$0xf]
    %v690 = vld [vmem:[%s679 + $0x28] sm:$0xf]
    %v691 = vld [vmem:[%s679 + $0x2c] sm:$0xf]
    %v692 = vld [vmem:[%s679 + $0x30] sm:$0xf]
    %v693 = vld [vmem:[%s679 + $0x34] sm:$0xf]
    %v694 = vld [vmem:[%s679 + $0x38] sm:$0xf]
    %v695 = vld [vmem:[%s679 + $0x3c] sm:$0xf]
    %v696 = vpack.c.bf16 %v678, %v678
    %v697 = vld [vmem:[#allocation8 + $0xb] sm:$0x1]
    %v698 = vlaneseq
    %v699 = vshrl.u32 %v698, 7
    %v700 = vsub.s32 0, %v699
    %v701 = vrot.slane %v697, %v700
    %v718 = vunpack.c.l.b16 %v680
    %v719 = vunpack.c.l.b16 %v681
    %v720 = vunpack.c.l.b16 %v682
    %v721 = vunpack.c.l.b16 %v683
    %v722 = vunpack.c.l.b16 %v684
    %v723 = vunpack.c.l.b16 %v685
    %v724 = vunpack.c.l.b16 %v686
    %v725 = vunpack.c.l.b16 %v687
    %v726 = vunpack.c.l.b16 %v688
    %v727 = vunpack.c.l.b16 %v689
    %v728 = vunpack.c.l.b16 %v690
    %v729 = vunpack.c.l.b16 %v691
    %v730 = vunpack.c.l.b16 %v692
    %v731 = vunpack.c.l.b16 %v693
    %v732 = vunpack.c.l.b16 %v694
    %v733 = vunpack.c.l.b16 %v695
    %v734 = vpack.c.b16 %v719, %v718
    %v735 = vpack.c.b16 %v721, %v720
    %v736 = vpack.c.b16 %v723, %v722
    %v737 = vpack.c.b16 %v725, %v724
    %v738 = vpack.c.b16 %v727, %v726
    %v739 = vpack.c.b16 %v729, %v728
    %v740 = vpack.c.b16 %v731, %v730
    %v741 = vpack.c.b16 %v733, %v732
    %750 = vmatprep.subr.bf16.mxu0 0
    %751 = vmatpush1.bf16.msra.mxu0 %v741
    %752 = vmatprep.subr.bf16.mxu0 0
    %753 = vmatpush1.bf16.msra.mxu0 %v740
    %754 = vmatprep.subr.bf16.mxu0 0
    %755 = vmatpush1.bf16.msra.mxu0 %v739
    %756 = vmatprep.subr.bf16.mxu0 0
    %757 = vmatpush1.bf16.msra.mxu0 %v738
    %758 = vmatprep.subr.bf16.mxu0 0
    %759 = vmatpush1.bf16.msra.mxu0 %v737
    %760 = vmatprep.subr.bf16.mxu0 0
    %761 = vmatpush1.bf16.msra.mxu0 %v736
    %762 = vmatprep.subr.bf16.mxu0 0
    %763 = vmatpush1.bf16.msra.mxu0 %v735
    %764 = vmatprep.subr.bf16.mxu0 0
    %765 = vmatpush1.bf16.msra.mxu0 %v734
    %766 = vmatprep.subr.bf16.mxu0 0
    %767 = vmatpush2.bf16.msra.mxu0 0
    %768 = vmatprep.subr.bf16.mxu0 0
    %769 = vmatpush2.bf16.msra.mxu0 0
    %770 = vmatprep.subr.bf16.mxu0 0
    %771 = vmatpush2.bf16.msra.mxu0 0
    %772 = vmatprep.subr.bf16.mxu0 0
    %773 = vmatpush2.bf16.msra.mxu0 0
    %774 = vmatprep.subr.bf16.mxu0 0
    %775 = vmatpush2.bf16.msra.mxu0 0
    %776 = vmatprep.subr.bf16.mxu0 0
    %777 = vmatpush2.bf16.msra.mxu0 0
    %778 = vmatprep.subr.bf16.mxu0 0
    %779 = vmatpush2.bf16.msra.mxu0 0
    %780 = vmatprep.subr.bf16.mxu0 0
    %781 = vmatpush2.bf16.msra.mxu0 0
    %782 = vmatprep.mubr.bf16.mxu0 0
    %783 = vmatmul.mubr.bf16.gmra.mxu0 %v696
    %v784 = vpop.f32.mrf.mxu0
    %v785 = vadd.f32 %v701, %v784
    %v786 = vpop.f32.mrf.mxu0
    %v787 = vpop.f32.mrf.mxu0
    %v788 = vpop.f32.mrf.mxu0
    %789 = vdwg.mxu0
    %v790 = vadd.f32 %v566, %v785
    %v791 = vld [vmem:[#allocation8 + $0xc] sm:$0x1]
    %v792 = vld [vmem:[#allocation8 + $0xd] sm:$0x1]
    %793 = vadd.xlane.f32.xlu0 %v790
    %v794 = vpop.xlane.xlu0 %793
    %v795 = vmul.f32 %v790, %v790
    %796 = vadd.xlane.f32.xlu0 %v795
    %v797 = vpop.xlane.xlu0 %796
    %v798 = vmul.f32 %v794, 0.015625
    %v799 = vmul.f32 %v797, 0.015625
    %v800 = vmul.f32 %v798, %v798
    %v801 = vsub.f32 %v799, %v800
    %v802 = vmax.f32 %v801, 0.0
    %v803 = vsub.f32 %v790, %v798
    %v804 = vadd.f32 %v802, 1e-05
    %v805 = vrsqrt.pop %v804
    %v806 = vmul.f32 %v803, %v805
    %v807 = vlaneseq
    %v808 = vshrl.u32 %v807, 7
    %v809 = vsub.s32 0, %v808
    %v810 = vrot.slane %v791, %v809
    %v811 = vmul.f32 %v806, %v810
    %v812 = vlaneseq
    %v813 = vshrl.u32 %v812, 7
    %v814 = vsub.s32 0, %v813
    %v815 = vrot.slane %v792, %v814
    %v816 = vadd.f32 %v811, %v815
    %s817 = scalar_lea.vmem [#allocation7], 320
    %v818 = vld [vmem:[%s817] sm:$0xf]
    %v819 = vld [vmem:[%s817 + $0x4] sm:$0xf]
    %v820 = vld [vmem:[%s817 + $0x8] sm:$0xf]
    %v821 = vld [vmem:[%s817 + $0xc] sm:$0xf]
    %v822 = vld [vmem:[%s817 + $0x10] sm:$0xf]
    %v823 = vld [vmem:[%s817 + $0x14] sm:$0xf]
    %v824 = vld [vmem:[%s817 + $0x18] sm:$0xf]
    %v825 = vld [vmem:[%s817 + $0x1c] sm:$0xf]
    %v826 = vld [vmem:[%s817 + $0x20] sm:$0xf]
    %v827 = vld [vmem:[%s817 + $0x24] sm:$0xf]
    %v828 = vld [vmem:[%s817 + $0x28] sm:$0xf]
    %v829 = vld [vmem:[%s817 + $0x2c] sm:$0xf]
    %v830 = vld [vmem:[%s817 + $0x30] sm:$0xf]
    %v831 = vld [vmem:[%s817 + $0x34] sm:$0xf]
    %v832 = vld [vmem:[%s817 + $0x38] sm:$0xf]
    %v833 = vld [vmem:[%s817 + $0x3c] sm:$0xf]
    %v834 = vpack.c.bf16 %v816, %v816
    %v835 = vld [vmem:[#allocation8 + $0xe] sm:$0x1]
    %v836 = vlaneseq
    %v837 = vshrl.u32 %v836, 7
    %v838 = vsub.s32 0, %v837
    %v839 = vrot.slane %v835, %v838
    %v856 = vunpack.c.l.b16 %v818
    %v857 = vunpack.c.l.b16 %v819
    %v858 = vunpack.c.l.b16 %v820
    %v859 = vunpack.c.l.b16 %v821
    %v860 = vunpack.c.l.b16 %v822
    %v861 = vunpack.c.l.b16 %v823
    %v862 = vunpack.c.l.b16 %v824
    %v863 = vunpack.c.l.b16 %v825
    %v864 = vunpack.c.l.b16 %v826
    %v865 = vunpack.c.l.b16 %v827
    %v866 = vunpack.c.l.b16 %v828
    %v867 = vunpack.c.l.b16 %v829
    %v868 = vunpack.c.l.b16 %v830
    %v869 = vunpack.c.l.b16 %v831
    %v870 = vunpack.c.l.b16 %v832
    %v871 = vunpack.c.l.b16 %v833
    %v872 = vpack.c.b16 %v857, %v856
    %v873 = vpack.c.b16 %v859, %v858
    %v874 = vpack.c.b16 %v861, %v860
    %v875 = vpack.c.b16 %v863, %v862
    %v876 = vpack.c.b16 %v865, %v864
    %v877 = vpack.c.b16 %v867, %v866
    %v878 = vpack.c.b16 %v869, %v868
    %v879 = vpack.c.b16 %v871, %v870
    %888 = vmatprep.subr.bf16.mxu0 0
    %889 = vmatpush1.bf16.msra.mxu0 %v879
    %890 = vmatprep.subr.bf16.mxu0 0
    %891 = vmatpush1.bf16.msra.mxu0 %v878
    %892 = vmatprep.subr.bf16.mxu0 0
    %893 = vmatpush1.bf16.msra.mxu0 %v877
    %894 = vmatprep.subr.bf16.mxu0 0
    %895 = vmatpush1.bf16.msra.mxu0 %v876
    %896 = vmatprep.subr.bf16.mxu0 0
    %897 = vmatpush1.bf16.msra.mxu0 %v875
    %898 = vmatprep.subr.bf16.mxu0 0
    %899 = vmatpush1.bf16.msra.mxu0 %v874
    %900 = vmatprep.subr.bf16.mxu0 0
    %901 = vmatpush1.bf16.msra.mxu0 %v873
    %902 = vmatprep.subr.bf16.mxu0 0
    %903 = vmatpush1.bf16.msra.mxu0 %v872
    %904 = vmatprep.subr.bf16.mxu0 0
    %905 = vmatpush2.bf16.msra.mxu0 0
    %906 = vmatprep.subr.bf16.mxu0 0
    %907 = vmatpush2.bf16.msra.mxu0 0
    %908 = vmatprep.subr.bf16.mxu0 0
    %909 = vmatpush2.bf16.msra.mxu0 0
    %910 = vmatprep.subr.bf16.mxu0 0
    %911 = vmatpush2.bf16.msra.mxu0 0
    %912 = vmatprep.subr.bf16.mxu0 0
    %913 = vmatpush2.bf16.msra.mxu0 0
    %914 = vmatprep.subr.bf16.mxu0 0
    %915 = vmatpush2.bf16.msra.mxu0 0
    %916 = vmatprep.subr.bf16.mxu0 0
    %917 = vmatpush2.bf16.msra.mxu0 0
    %918 = vmatprep.subr.bf16.mxu0 0
    %919 = vmatpush2.bf16.msra.mxu0 0
    %920 = vmatprep.mubr.bf16.mxu0 0
    %921 = vmatmul.mubr.bf16.gmra.mxu0 %v834
    %v922 = vpop.f32.mrf.mxu0
    %v923 = vadd.f32 %v839, %v922
    %v924 = vpop.f32.mrf.mxu0
    %v925 = vpop.f32.mrf.mxu0
    %v926 = vpop.f32.mrf.mxu0
    %927 = vdwg.mxu0
    %928 = vst [vmem:[#allocation10] sm:$0xff] %v923
    // Predicated region
    $region34: #{transformer_cluster_net.1} parent=1 // pred_check
      _
    $region35: #{transformer_cluster_net.1} parent=1 // pred_check_branch
      %930 = sbr.rel (0) target = $region37
    $region36: #{transformer_cluster_net.1} parent=1 // pred_region
      %s932 = ssub.s32 128, 128
      %933 = vsyncadd [#allocation4], %s932
      %s935 = sshll.u32 [#allocation10], 4
      %s936 = int_to_ptr.vmem [resolvable:$true] %s935
      %938 = dma.vmem_to_hbm [thread:$0]  %s936, 128, %s4, [#allocation4]
    $region37: #{transformer_cluster_net.1} parent=1 // pred_fallthru
      _
    // Predicated region
    $region38: #{transformer_cluster_net.1} parent=1 // pred_check
      _
    $region39: #{transformer_cluster_net.1} parent=1 // pred_check_branch
      %940 = sbr.rel (0) target = $region41
    $region40: #{transformer_cluster_net.1} parent=1 // pred_region
      %941 = dma.done [#allocation4], 128
    $region41: #{transformer_cluster_net.1} parent=1 // pred_fallthru
      _
    %942 = vsyncpa [#allocation3], 1
    %943 = vsyncpa [#allocation6], 1
    %944 = vsyncpa [#allocation9], 1
    %945 = vsyncpa [#allocation4], 1

</llo_original>
